<compile_context>
chip_gen: v5e
topology: v5e:2x2
jax: 0.10.0
libtpu: 0.0.40
codegen_flags: <defaults>
</compile_context>

<pallas_src>
import math

import jax
import jax.numpy as jnp
from jax.experimental import pallas as pl
from jax.experimental.pallas import tpu as pltpu


def _scaling_kernel(x_ref, scale_ref, shift_ref, o_ref):
    # x_ref:     (tm, tn) tile of the (folded) input rows
    # scale_ref: (1, tn)  broadcast parameters (resident across row steps)
    # shift_ref: (1, tn)
    x = x_ref[...].astype(jnp.float32)
    scale = scale_ref[...].astype(jnp.float32)   # broadcasts over rows
    shift = shift_ref[...].astype(jnp.float32)
    o_ref[...] = (scale * x + shift).astype(o_ref.dtype)


def _sublane_multiple(dtype) -> int:
    itemsize = jnp.dtype(dtype).itemsize
    if itemsize >= 4:
        return 8
    if itemsize == 2:
        return 16
    return 32


def scaling_forward(x, scale, shift, x_mask=None):
    """Pallas equivalent of Scaling.forward(x, x_mask).

    x:      (B, T, C)
    scale:  (1, 1, C)
    shift:  (1, 1, C)
    x_mask: unused (the PyTorch forward ignores it), kept for signature parity.
    """
    B, T, C = x.shape
    out_dtype = x.dtype
    M = B * T

    # ---- wrapper-side layout plumbing (all reshapes are free / row-major) ----
    x2 = x.reshape(M, C)
    scale1 = scale.reshape(C)
    shift1 = shift.reshape(C)

    # Smallest k such that (k * C) % 128 == 0 -> lane-dense last dim.
    k = 128 // math.gcd(C, 128)
    if k > 1 and M % k == 0:
        Mp, Cp = M // k, k * C
        x2 = x2.reshape(Mp, Cp)
        scale1 = jnp.tile(scale1, (k,))
        shift1 = jnp.tile(shift1, (k,))
    else:
        # Fallback: last block dim equals the full array dim (always legal).
        Mp, Cp = M, C

    scale2 = scale1.reshape(1, Cp)
    shift2 = shift1.reshape(1, Cp)

    itemsize = jnp.dtype(out_dtype).itemsize
    sub = _sublane_multiple(out_dtype)

    # ---- lane tile: keep the full folded row unless it is very wide ----
    if Cp % 128 == 0 and Cp > 8192:
        tn = 8192
        while Cp % tn != 0:     # largest 128-multiple divisor <= 8192
            tn -= 128
    else:
        tn = Cp                  # full-extent last dim (always legal)

    # ---- dtype-aware, VMEM-budgeted row tile ----
    vmem_budget = 12 * 1024 * 1024            # 2x in + 2x out double buffers
    tm = max(sub, vmem_budget // (4 * tn * itemsize))
    tm = min(tm, 2048)
    tm = (tm // sub) * sub
    if tm >= Mp:
        tm = Mp                                # full-extent block, always legal

    grid = (pl.cdiv(Mp, tm), pl.cdiv(Cp, tn))

    y2 = pl.pallas_call(
        _scaling_kernel,
        out_shape=jax.ShapeDtypeStruct((Mp, Cp), out_dtype),
        grid=grid,
        in_specs=[
            pl.BlockSpec((tm, tn), lambda i, j: (i, j)),
            pl.BlockSpec((1, tn), lambda i, j: (0, j)),
            pl.BlockSpec((1, tn), lambda i, j: (0, j)),
        ],
        out_specs=pl.BlockSpec((tm, tn), lambda i, j: (i, j)),
        compiler_params=pltpu.CompilerParams(
            dimension_semantics=("parallel", "parallel"),
        ),
        # TODO(synk): expose input_output_aliases={0: 0} for callers that can
        # donate x (in-place scale+shift); left off here so x stays valid.
    )(x2, scale2, shift2)

    return y2.reshape(B, T, C)


if __name__ == "__main__":
    B, T, C = 2, 8, 32  # batch, seq, num_channels

    key = jax.random.PRNGKey(0)
    kx, ks, kh = jax.random.split(key, 3)

    x = jax.random.normal(kx, (B, T, C), dtype=jnp.float32)
    x_mask = jnp.ones((B, 1, T), dtype=jnp.bool_)  # ignored, as in PyTorch forward

    # Parameters as in nn.Parameter(torch.ones/zeros(1, 1, C)), perturbed
    # deterministically so the test isn't a trivial identity.
    scale = jnp.ones((1, 1, C), dtype=jnp.float32) + 0.1 * jax.random.normal(ks, (1, 1, C))
    shift = jnp.zeros((1, 1, C), dtype=jnp.float32) + 0.1 * jax.random.normal(kh, (1, 1, C))

    out = scaling_forward(x, scale, shift, x_mask)
    out = jax.block_until_ready(out)

    # Reference in plain JAX (same broadcast semantics as PyTorch).
    ref = scale * x + shift
    assert out.shape == (B, T, C)
    assert jnp.allclose(out, ref, atol=1e-6, rtol=1e-6)

    print("KERNEL_OK")
</pallas_src>

<mosaic_0001>
module attributes {stable_mosaic.version = 11 : i64} {
  func.func @_scaling_kernel(%arg0: i32, %arg1: i32, %arg2: memref<4x128xf32, #tpu.memory_space<vmem>>, %arg3: memref<1x128xf32, #tpu.memory_space<vmem>>, %arg4: memref<1x128xf32, #tpu.memory_space<vmem>>, %arg5: memref<4x128xf32, #tpu.memory_space<vmem>>) attributes {dimension_semantics = [#tpu.dimension_semantics<parallel>, #tpu.dimension_semantics<parallel>], iteration_bounds = array<i64: 1, 1>, scalar_prefetch = 0 : i64, scratch_operands = 0 : i64, tpu.core_type = #tpu.core_type<tc>, window_params = [{transform_indices = @transform_0, window_bounds = array<i64: 4, 128>}, {transform_indices = @transform_1, window_bounds = array<i64: 1, 128>}, {transform_indices = @transform_2, window_bounds = array<i64: 1, 128>}, {transform_indices = @transform_3, window_bounds = array<i64: 4, 128>}]} {
    %c0 = arith.constant 0 : index
    %c0_0 = arith.constant 0 : index
    %0 = vector.load %arg2[%c0, %c0_0] : memref<4x128xf32, #tpu.memory_space<vmem>>, vector<4x128xf32>
    %c0_1 = arith.constant 0 : index
    %c0_2 = arith.constant 0 : index
    %1 = vector.load %arg3[%c0_1, %c0_2] : memref<1x128xf32, #tpu.memory_space<vmem>>, vector<1x128xf32>
    %c0_3 = arith.constant 0 : index
    %c0_4 = arith.constant 0 : index
    %2 = vector.load %arg4[%c0_3, %c0_4] : memref<1x128xf32, #tpu.memory_space<vmem>>, vector<1x128xf32>
    %3 = vector.broadcast %1 : vector<1x128xf32> to vector<4x128xf32>
    %4 = arith.mulf %3, %0 : vector<4x128xf32>
    %5 = vector.broadcast %2 : vector<1x128xf32> to vector<4x128xf32>
    %6 = arith.addf %4, %5 : vector<4x128xf32>
    %c0_5 = arith.constant 0 : index
    %c0_6 = arith.constant 0 : index
    %7 = vector.load %arg5[%c0_5, %c0_6] : memref<4x128xf32, #tpu.memory_space<vmem>>, vector<4x128xf32>
    tpu.vector_store %arg5[%c0_5, %c0_6], %6 {strides = array<i32>} : memref<4x128xf32, #tpu.memory_space<vmem>>, vector<4x128xf32>,
    return
  }
  func.func @transform_0(%arg0: i32, %arg1: i32) -> (i32, i32) {
    %c0_i32 = arith.constant 0 : i32
    return %arg0, %arg1 : i32, i32
  }
  func.func @transform_1(%arg0: i32, %arg1: i32) -> (i32, i32) {
    %c0_i32 = arith.constant 0 : i32
    %c0_i32_0 = arith.constant 0 : i32
    return %c0_i32, %arg1 : i32, i32
  }
  func.func @transform_2(%arg0: i32, %arg1: i32) -> (i32, i32) {
    %c0_i32 = arith.constant 0 : i32
    %c0_i32_0 = arith.constant 0 : i32
    return %c0_i32, %arg1 : i32, i32
  }
  func.func @transform_3(%arg0: i32, %arg1: i32) -> (i32, i32) {
    %c0_i32 = arith.constant 0 : i32
    return %arg0, %arg1 : i32, i32
  }
}

</mosaic_0001>

<llo_original>
// kernel: tpu_custom_call.1
$region0: #{tpu_custom_call.1}
  #allocation0 [shape = 'u32[]', space=smem, size = 0x4, offset = 0x4, fixed_abs, tag = 'smem constant byte address 0x4 - core index']
  #allocation1 [shape = 'u32[72,128]{1,0:T(1,128)}', space=vmem, size = 0x9000, scoped, tag = 'internal scratch']
  %s0 = inlined_call_operand.hbm [shape: f32[4,128], index: 0, kind: input, shape index: {}]
  %s1 = inlined_call_operand.hbm [shape: f32[1,128], index: 1, kind: input, shape index: {}]
  %s2 = inlined_call_operand.vmem [shape: f32[1,128], index: 2, kind: input, shape index: {}]
  %s3 = inlined_call_operand.hbm [shape: f32[4,128], index: 3, kind: output, shape index: {}]
  %s4 = sld [smem:[#allocation0]]
  $region30: #{tpu_custom_call.1} parent=0
    _
  %s6 = ssub.s32 1, %s4
  %s7 = scalar_select 0, %s6, %s4
  $region1: #{tpu_custom_call.1} parent=0
    #allocation2 [shape = 'u8[2048]{0}', space=vmem, size = 0x800, scoped, tag = 'input window, operand 0, single buffered']
    #allocation3 [shape = 's32[1]{0}', space=sflag, size = 0x4, scoped, tag = 'scoped memory for tpu_custom_call.1']
    #allocation4 [shape = 's32[1]{0}', space=sflag, size = 0x4, scoped, tag = 'scoped memory for tpu_custom_call.1']
    #allocation5 [shape = 'u8[512]{0}', space=vmem, size = 0x400, scoped, tag = 'input window, operand 1, single buffered']
    #allocation6 [shape = 's32[1]{0}', space=sflag, size = 0x4, scoped, tag = 'scoped memory for tpu_custom_call.1']
    #allocation7 [shape = 'u8[2048]{0}', space=vmem, size = 0x800, scoped, tag = 'output window, operand 0, single buffered']
    %8 = vsyncpa [#allocation3], 0
    %9 = vsyncpa [#allocation6], 0
    %10 = vsyncpa [#allocation4], 0
    // Predicated region
    $region2: #{tpu_custom_call.1} parent=1 // pred_check
      _
    $region3: #{tpu_custom_call.1} parent=1 // pred_check_branch
      %12 = sbr.rel (0) target = $region5
    $region4: #{tpu_custom_call.1} parent=1 // pred_region
      %14 = vsyncadd [#allocation3], 0
      %s16 = sshll.u32 %s0, 4
      %s17 = int_to_ptr.hbm [resolvable:$true] %s16
      %s18 = sshll.u32 [#allocation2], 4
      %s19 = int_to_ptr.vmem [resolvable:$true] %s18
      %21 = dma.hbm_to_vmem [thread:$0]  %s17, 64, %s19, [#allocation3]
    $region5: #{tpu_custom_call.1} parent=1 // pred_fallthru
      _
    // Predicated region
    $region6: #{tpu_custom_call.1} parent=1 // pred_check
      _
    $region7: #{tpu_custom_call.1} parent=1 // pred_check_branch
      %23 = sbr.rel (0) target = $region9
    $region8: #{tpu_custom_call.1} parent=1 // pred_region
      %25 = vsyncadd [#allocation6], 0
      %s27 = sshll.u32 %s1, 4
      %s28 = int_to_ptr.hbm [resolvable:$true] %s27
      %s29 = sshll.u32 [#allocation5], 4
      %s30 = int_to_ptr.vmem [resolvable:$true] %s29
      %32 = dma.hbm_to_vmem [thread:$0]  %s28, 16, %s30, [#allocation6]
    $region9: #{tpu_custom_call.1} parent=1 // pred_fallthru
      _
    // Predicated region
    $region10: #{tpu_custom_call.1} parent=1 // pred_check
      _
    $region11: #{tpu_custom_call.1} parent=1 // pred_check_branch
      %34 = sbr.rel (0) target = $region13
    $region12: #{tpu_custom_call.1} parent=1 // pred_region
      _
    $region13: #{tpu_custom_call.1} parent=1 // pred_fallthru
      _
    // Predicated region
    $region14: #{tpu_custom_call.1} parent=1 // pred_check
      _
    $region15: #{tpu_custom_call.1} parent=1 // pred_check_branch
      %36 = sbr.rel (0) target = $region17
    $region16: #{tpu_custom_call.1} parent=1 // pred_region
      %38 = dma.done [#allocation3], 64
    $region17: #{tpu_custom_call.1} parent=1 // pred_fallthru
      _
    // Predicated region
    $region18: #{tpu_custom_call.1} parent=1 // pred_check
      _
    $region19: #{tpu_custom_call.1} parent=1 // pred_check_branch
      %40 = sbr.rel (0) target = $region21
    $region20: #{tpu_custom_call.1} parent=1 // pred_region
      %42 = dma.done [#allocation6], 16
    $region21: #{tpu_custom_call.1} parent=1 // pred_fallthru
      _
    %v43 = vld [vmem:[#allocation2] sm:$0xf]
    %v44 = vld [vmem:[#allocation5] sm:$0x1]
    %v45 = vld [vmem:[%s2] sm:$0x1]
    %v47 = vperm.slane %v44, 0
    %v49 = vmul.f32 %v47, %v43
    %v51 = vperm.slane %v45, 0
    %v53 = vadd.f32 %v49, %v51
    %54 = vst [vmem:[#allocation7] sm:$0xf] %v53
    // Predicated region
    $region22: #{tpu_custom_call.1} parent=1 // pred_check
      _
    $region23: #{tpu_custom_call.1} parent=1 // pred_check_branch
      %56 = sbr.rel (0) target = $region25
    $region24: #{tpu_custom_call.1} parent=1 // pred_region
      %58 = vsyncadd [#allocation4], 0
      %s60 = sshll.u32 [#allocation7], 4
      %s61 = int_to_ptr.vmem [resolvable:$true] %s60
      %s62 = sshll.u32 %s3, 4
      %s63 = int_to_ptr.hbm [resolvable:$true] %s62
      %65 = dma.vmem_to_hbm [thread:$0]  %s61, 64, %s63, [#allocation4]
    $region25: #{tpu_custom_call.1} parent=1 // pred_fallthru
      _
    // Predicated region
    $region26: #{tpu_custom_call.1} parent=1 // pred_check
      _
    $region27: #{tpu_custom_call.1} parent=1 // pred_check_branch
      %67 = sbr.rel (0) target = $region29
    $region28: #{tpu_custom_call.1} parent=1 // pred_region
      %69 = dma.done [#allocation4], 64
    $region29: #{tpu_custom_call.1} parent=1 // pred_fallthru
      _
    %70 = vsyncpa [#allocation3], 1
    %71 = vsyncpa [#allocation6], 1
    %72 = vsyncpa [#allocation4], 1

</llo_original>
